<compile_context>
chip_gen: v7x
topology: tpu7x:2x2x1
jax: 0.10.0
libtpu: 0.0.40
codegen_flags: <defaults>
</compile_context>

<pallas_src>
import math
import functools

import jax
import jax.numpy as jnp
from jax.experimental import pallas as pl
from jax.experimental.pallas import tpu as pltpu


def _cl_head_kernel(
    x2_ref, x3_ref, w2_ref, b2_ref, w3_ref, b3_ref,
    loss_ref, acc_ref,
    *, scale, normalize, ce_mean,
):
    x2 = x2_ref[...]                      # [B, H]
    x3 = x3_ref[...]                      # [B, H]
    B = x2.shape[0]

    mm = (((1,), (0,)), ((), ()))
    p2 = jax.lax.dot_general(x2, w2_ref[...], dimension_numbers=mm,
                             preferred_element_type=jnp.float32) + b2_ref[...]
    p3 = jax.lax.dot_general(x3, w3_ref[...], dimension_numbers=mm,
                             preferred_element_type=jnp.float32) + b3_ref[...]

    if normalize:
        # F.normalize(x, dim=-1): x / max(||x||_2, 1e-12)
        p2 = p2 / jnp.maximum(jnp.sqrt(jnp.sum(p2 * p2, axis=-1, keepdims=True)), 1e-12)
        p3 = p3 / jnp.maximum(jnp.sqrt(jnp.sum(p3 * p3, axis=-1, keepdims=True)), 1e-12)

    # logits[i, j] = <p2[i], p3[j]> : contract dim 1 of both (no transpose materialized)
    logits = jax.lax.dot_general(p2, p3, dimension_numbers=(((1,), (1,)), ((), ())),
                                 preferred_element_type=jnp.float32)     # [B, B]
    if scale is not None:                  # only when 1/tau could not be folded into weights
        logits = logits * scale

    row_ids = jax.lax.broadcasted_iota(jnp.int32, (B, B), 0)
    col_ids = jax.lax.broadcasted_iota(jnp.int32, (B, B), 1)
    diag_mask = row_ids == col_ids
    diag_only = jnp.where(diag_mask, logits, 0.0)
    diag_col = jnp.sum(diag_only, axis=1, keepdims=True)                 # [B, 1]
    diag_row = jnp.sum(diag_only, axis=0, keepdims=True)                 # [1, B]

    # do_CL(pooled_cl_2d, pooled_cl_3d): cross-entropy over rows, labels = arange(B)
    row_max = jnp.max(logits, axis=1, keepdims=True)
    row_lse = row_max + jnp.log(jnp.sum(jnp.exp(logits - row_max), axis=1, keepdims=True))
    loss1 = jnp.sum(row_lse - diag_col)
    acc1 = jnp.sum(jnp.where(diag_col >= row_max, 1.0, 0.0))

    # do_CL(pooled_cl_3d, pooled_cl_2d): uses logits.T -> reuse the same matrix
    # with column-wise reductions (second matmul eliminated).
    col_max = jnp.max(logits, axis=0, keepdims=True)
    col_lse = col_max + jnp.log(jnp.sum(jnp.exp(logits - col_max), axis=0, keepdims=True))
    loss2 = jnp.sum(col_lse - diag_row)
    acc2 = jnp.sum(jnp.where(diag_row >= col_max, 1.0, 0.0))

    inv_den = (0.5 / B) if ce_mean else 0.5
    loss_ref[0] = (loss1 + loss2) * inv_den
    acc_ref[0] = (acc1 + acc2) * (0.5 / B)


def graphormer_cl_head(
    pooled_output_2d, pooled_output_3d, params,
    *, tau=0.1, normalize=False, reduction="sum",
    cl_similarity_metric="infonce",
):
    # TODO(synk): 'directclr' branch (plain column slicing, no projection),
    # the feature=True early-return, and the torch.distributed all_gather
    # (would need make_async_remote_copy) are not implemented here.
    assert cl_similarity_metric == "infonce"

    w2 = params["w_2d"].astype(jnp.float32)
    b2 = params["b_2d"].astype(jnp.float32)
    w3 = params["w_3d"].astype(jnp.float32)
    b3 = params["b_3d"].astype(jnp.float32)

    if not normalize:
        # Fold 1/tau into the 2d projection host-side; logits and logits.T
        # share the same matrix, so one folded factor covers both directions.
        inv_tau = 1.0 / tau
        w2 = w2 * inv_tau
        b2 = b2 * inv_tau
        in_kernel_scale = None
    else:
        # Normalization is scale-invariant, so the factor must be applied
        # after normalization, inside the kernel.
        in_kernel_scale = 1.0 / tau

    kern = functools.partial(
        _cl_head_kernel,
        scale=in_kernel_scale,
        normalize=normalize,
        ce_mean=(reduction == "mean"),
    )

    loss, acc = pl.pallas_call(
        kern,
        out_shape=(
            jax.ShapeDtypeStruct((1,), jnp.float32),
            jax.ShapeDtypeStruct((1,), jnp.float32),
        ),
        in_specs=[pl.BlockSpec(memory_space=pltpu.VMEM)] * 6,
        out_specs=(
            pl.BlockSpec(memory_space=pltpu.SMEM),
            pl.BlockSpec(memory_space=pltpu.SMEM),
        ),
    )(
        pooled_output_2d.astype(jnp.float32),
        pooled_output_3d.astype(jnp.float32),
        w2, b2, w3, b3,
    )
    return loss[0], acc[0]


def init_params(key, H, P):
    ks = jax.random.split(key, 4)
    return {
        "w_2d": jax.random.normal(ks[0], (H, P), jnp.float32) / math.sqrt(H),
        "b_2d": jax.random.normal(ks[1], (1, P), jnp.float32) * 0.02,
        "w_3d": jax.random.normal(ks[2], (H, P), jnp.float32) / math.sqrt(H),
        "b_3d": jax.random.normal(ks[3], (1, P), jnp.float32) * 0.02,
    }


def reference(pooled_2d, pooled_3d, params, *, tau, normalize, reduction):
    """Pure-JAX replica of the PyTorch forward (infonce branch)."""
    p2 = pooled_2d @ params["w_2d"] + params["b_2d"]
    p3 = pooled_3d @ params["w_3d"] + params["b_3d"]
    if normalize:
        p2 = p2 / jnp.maximum(jnp.linalg.norm(p2, axis=-1, keepdims=True), 1e-12)
        p3 = p3 / jnp.maximum(jnp.linalg.norm(p3, axis=-1, keepdims=True), 1e-12)

    def do_cl(X, Y):
        B = X.shape[0]
        logits = (X @ Y.T) / tau
        labels = jnp.arange(B)
        lse = jax.scipy.special.logsumexp(logits, axis=1)
        nll = lse - logits[labels, labels]
        loss = jnp.sum(nll) if reduction == "sum" else jnp.mean(nll)
        pred = jnp.argmax(logits, axis=1)
        acc = jnp.mean((pred == labels).astype(jnp.float32))
        return loss, acc

    l1, a1 = do_cl(p2, p3)
    l2, a2 = do_cl(p3, p2)
    return (l1 + l2) / 2.0, (a1 + a2) / 2.0


if __name__ == "__main__":
    B, H, P = 8, 32, 64   # batch, hidden_size, projection_dim
    key = jax.random.PRNGKey(0)
    k2d, k3d, kw = jax.random.split(key, 3)

    pooled_output_2d = jax.random.normal(k2d, (B, H), jnp.float32)
    pooled_output_3d = jax.random.normal(k3d, (B, H), jnp.float32)
    params = init_params(kw, H, P)

    loss, acc = graphormer_cl_head(
        pooled_output_2d, pooled_output_3d, params,
        tau=0.1, normalize=False, reduction="sum",
        cl_similarity_metric="infonce")
    loss = jax.block_until_ready(loss)
    acc = jax.block_until_ready(acc)

    loss_ref, acc_ref = reference(
        pooled_output_2d, pooled_output_3d, params,
        tau=0.1, normalize=False, reduction="sum")

    rel = abs(float(loss) - float(loss_ref)) / max(abs(float(loss_ref)), 1e-6)
    assert rel < 1e-3, f"loss mismatch: rel={rel} ({float(loss)} vs {float(loss_ref)})"
    assert abs(float(acc) - float(acc_ref)) < 1e-6, \
        f"acc mismatch: {float(acc)} vs {float(acc_ref)}"

    print("KERNEL_OK")
</pallas_src>

<mosaic_0001>
module attributes {stable_mosaic.version = 11 : i64} {
  func.func @_cl_head_kernel(%arg0: memref<8x32xf32, #tpu.memory_space<vmem>>, %arg1: memref<8x32xf32, #tpu.memory_space<vmem>>, %arg2: memref<32x64xf32, #tpu.memory_space<vmem>>, %arg3: memref<1x64xf32, #tpu.memory_space<vmem>>, %arg4: memref<32x64xf32, #tpu.memory_space<vmem>>, %arg5: memref<1x64xf32, #tpu.memory_space<vmem>>, %arg6: memref<1xf32, #tpu.memory_space<smem>>, %arg7: memref<1xf32, #tpu.memory_space<smem>>) attributes {dimension_semantics = [], scalar_prefetch = 0 : i64, scratch_operands = 0 : i64, tpu.core_type = #tpu.core_type<tc>} {
    %c0 = arith.constant 0 : index
    %c0_0 = arith.constant 0 : index
    %0 = vector.load %arg0[%c0, %c0_0] : memref<8x32xf32, #tpu.memory_space<vmem>>, vector<8x32xf32>
    %c0_1 = arith.constant 0 : index
    %c0_2 = arith.constant 0 : index
    %1 = vector.load %arg1[%c0_1, %c0_2] : memref<8x32xf32, #tpu.memory_space<vmem>>, vector<8x32xf32>
    %c0_3 = arith.constant 0 : index
    %c0_4 = arith.constant 0 : index
    %2 = vector.load %arg2[%c0_3, %c0_4] : memref<32x64xf32, #tpu.memory_space<vmem>>, vector<32x64xf32>
    %cst = arith.constant dense<0.000000e+00> : vector<8x64xf32>
    %3 = tpu.matmul %0, %2, %cst {dimension_numbers = #tpu.dot_dimension_numbers<[1], [0], [0], [1], [0, 0, 1, 1], [], []>} : vector<8x32xf32>, vector<32x64xf32>, vector<8x64xf32> -> vector<8x64xf32>
    %c0_5 = arith.constant 0 : index
    %c0_6 = arith.constant 0 : index
    %4 = vector.load %arg3[%c0_5, %c0_6] : memref<1x64xf32, #tpu.memory_space<vmem>>, vector<1x64xf32>
    %5 = vector.broadcast %4 : vector<1x64xf32> to vector<8x64xf32>
    %6 = arith.addf %3, %5 : vector<8x64xf32>
    %c0_7 = arith.constant 0 : index
    %c0_8 = arith.constant 0 : index
    %7 = vector.load %arg4[%c0_7, %c0_8] : memref<32x64xf32, #tpu.memory_space<vmem>>, vector<32x64xf32>
    %cst_9 = arith.constant dense<0.000000e+00> : vector<8x64xf32>
    %8 = tpu.matmul %1, %7, %cst_9 {dimension_numbers = #tpu.dot_dimension_numbers<[1], [0], [0], [1], [0, 0, 1, 1], [], []>} : vector<8x32xf32>, vector<32x64xf32>, vector<8x64xf32> -> vector<8x64xf32>
    %c0_10 = arith.constant 0 : index
    %c0_11 = arith.constant 0 : index
    %9 = vector.load %arg5[%c0_10, %c0_11] : memref<1x64xf32, #tpu.memory_space<vmem>>, vector<1x64xf32>
    %10 = vector.broadcast %9 : vector<1x64xf32> to vector<8x64xf32>
    %11 = arith.addf %8, %10 : vector<8x64xf32>
    %cst_12 = arith.constant dense<0.000000e+00> : vector<8x8xf32>
    %12 = tpu.matmul %6, %11, %cst_12 {dimension_numbers = #tpu.dot_dimension_numbers<[1], [1], [0], [0], [0, 0, 1, 0], [], []>} : vector<8x64xf32>, vector<8x64xf32>, vector<8x8xf32> -> vector<8x8xf32>
    %13 = tpu.iota {dimensions = array<i32: 0>} : vector<8x8xi32>
    %14 = tpu.iota {dimensions = array<i32: 1>} : vector<8x8xi32>
    %15 = arith.cmpi eq, %13, %14 : vector<8x8xi32>
    %cst_13 = arith.constant 0.000000e+00 : f32
    %16 = vector.broadcast %cst_13 : f32 to vector<8x8xf32>
    %17 = arith.select %15, %12, %16 : vector<8x8xi1>, vector<8x8xf32>
    %cst_14 = arith.constant dense<0.000000e+00> : vector<8xf32>
    %18 = vector.multi_reduction <add>, %17, %cst_14 [1] : vector<8x8xf32> to vector<8xf32>
    %19 = vector.shape_cast %18 : vector<8xf32> to vector<8x1xf32>
    %cst_15 = arith.constant dense<0.000000e+00> : vector<8xf32>
    %20 = vector.multi_reduction <add>, %17, %cst_15 [0] : vector<8x8xf32> to vector<8xf32>
    %21 = vector.shape_cast %20 : vector<8xf32> to vector<1x8xf32>
    %cst_16 = arith.constant dense<0xFF800000> : vector<8xf32>
    %22 = vector.multi_reduction <maximumf>, %12, %cst_16 [1] : vector<8x8xf32> to vector<8xf32>
    %23 = vector.shape_cast %22 : vector<8xf32> to vector<8x1xf32>
    %24 = vector.broadcast %23 : vector<8x1xf32> to vector<8x8xf32>
    %25 = arith.subf %12, %24 : vector<8x8xf32>
    %26 = math.exp %25 : vector<8x8xf32>
    %cst_17 = arith.constant dense<0.000000e+00> : vector<8xf32>
    %27 = vector.multi_reduction <add>, %26, %cst_17 [1] : vector<8x8xf32> to vector<8xf32>
    %28 = vector.shape_cast %27 : vector<8xf32> to vector<8x1xf32>
    %29 = math.log %28 : vector<8x1xf32>
    %30 = arith.addf %23, %29 : vector<8x1xf32>
    %31 = arith.subf %30, %19 : vector<8x1xf32>
    %32 = vector.shape_cast %31 : vector<8x1xf32> to vector<1x8x1xf32>
    %cst_18 = arith.constant dense<0.000000e+00> : vector<1xf32>
    %33 = vector.multi_reduction <add>, %32, %cst_18 [1, 2] : vector<1x8x1xf32> to vector<1xf32>
    %34 = vector.shape_cast %33 : vector<1xf32> to vector<1x1x1xf32>
    %35 = vector.extract %34[0, 0, 0] : f32 from vector<1x1x1xf32>
    %36 = arith.cmpf oge, %19, %23 : vector<8x1xf32>
    %cst_19 = arith.constant 1.000000e+00 : f32
    %cst_20 = arith.constant 0.000000e+00 : f32
    %37 = vector.broadcast %cst_19 : f32 to vector<8x1xf32>
    %38 = vector.broadcast %cst_20 : f32 to vector<8x1xf32>
    %39 = arith.select %36, %37, %38 : vector<8x1xi1>, vector<8x1xf32>
    %40 = vector.shape_cast %39 : vector<8x1xf32> to vector<1x8x1xf32>
    %cst_21 = arith.constant dense<0.000000e+00> : vector<1xf32>
    %41 = vector.multi_reduction <add>, %40, %cst_21 [1, 2] : vector<1x8x1xf32> to vector<1xf32>
    %42 = vector.shape_cast %41 : vector<1xf32> to vector<1x1x1xf32>
    %43 = vector.extract %42[0, 0, 0] : f32 from vector<1x1x1xf32>
    %cst_22 = arith.constant dense<0xFF800000> : vector<8xf32>
    %44 = vector.multi_reduction <maximumf>, %12, %cst_22 [0] : vector<8x8xf32> to vector<8xf32>
    %45 = vector.shape_cast %44 : vector<8xf32> to vector<1x8xf32>
    %46 = vector.broadcast %45 : vector<1x8xf32> to vector<8x8xf32>
    %47 = arith.subf %12, %46 : vector<8x8xf32>
    %48 = math.exp %47 : vector<8x8xf32>
    %cst_23 = arith.constant dense<0.000000e+00> : vector<8xf32>
    %49 = vector.multi_reduction <add>, %48, %cst_23 [0] : vector<8x8xf32> to vector<8xf32>
    %50 = vector.shape_cast %49 : vector<8xf32> to vector<1x8xf32>
    %51 = math.log %50 : vector<1x8xf32>
    %52 = arith.addf %45, %51 : vector<1x8xf32>
    %53 = arith.subf %52, %21 : vector<1x8xf32>
    %54 = vector.shape_cast %53 : vector<1x8xf32> to vector<1x1x8xf32>
    %cst_24 = arith.constant dense<0.000000e+00> : vector<1xf32>
    %55 = vector.multi_reduction <add>, %54, %cst_24 [1, 2] : vector<1x1x8xf32> to vector<1xf32>
    %56 = vector.shape_cast %55 : vector<1xf32> to vector<1x1x1xf32>
    %57 = vector.extract %56[0, 0, 0] : f32 from vector<1x1x1xf32>
    %58 = arith.cmpf oge, %21, %45 : vector<1x8xf32>
    %cst_25 = arith.constant 1.000000e+00 : f32
    %cst_26 = arith.constant 0.000000e+00 : f32
    %59 = vector.broadcast %cst_25 : f32 to vector<1x8xf32>
    %60 = vector.broadcast %cst_26 : f32 to vector<1x8xf32>
    %61 = arith.select %58, %59, %60 : vector<1x8xi1>, vector<1x8xf32>
    %62 = vector.shape_cast %61 : vector<1x8xf32> to vector<1x1x8xf32>
    %cst_27 = arith.constant dense<0.000000e+00> : vector<1xf32>
    %63 = vector.multi_reduction <add>, %62, %cst_27 [1, 2] : vector<1x1x8xf32> to vector<1xf32>
    %64 = vector.shape_cast %63 : vector<1xf32> to vector<1x1x1xf32>
    %65 = vector.extract %64[0, 0, 0] : f32 from vector<1x1x1xf32>
    %66 = arith.addf %35, %57 : f32
    %cst_28 = arith.constant 5.000000e-01 : f32
    %67 = arith.mulf %66, %cst_28 : f32
    %c0_29 = arith.constant 0 : index
    %68 = memref.load %arg6[%c0_29] : memref<1xf32, #tpu.memory_space<smem>>
    memref.store %67, %arg6[%c0_29] : memref<1xf32, #tpu.memory_space<smem>>
    %69 = arith.addf %43, %65 : f32
    %cst_30 = arith.constant 6.250000e-02 : f32
    %70 = arith.mulf %69, %cst_30 : f32
    %c0_31 = arith.constant 0 : index
    %71 = memref.load %arg7[%c0_31] : memref<1xf32, #tpu.memory_space<smem>>
    memref.store %70, %arg7[%c0_31] : memref<1xf32, #tpu.memory_space<smem>>
    return
  }
}

</mosaic_0001>

<llo_original>
// kernel: tpu_custom_call.1
$region0: #{tpu_custom_call.1}
  #allocation0 [shape = 'u32[]', space=smem, size = 0x4, offset = 0x4, fixed_abs, tag = 'smem constant byte address 0x4 - core index']
  #allocation1 [shape = 'u32[144,128]{1,0:T(1,128)}', space=vmem, size = 0x12000, scoped, tag = 'internal scratch']
  %s0 = inlined_call_operand.hbm [shape: f32[8,32], index: 0, kind: input, shape index: {}]
  %s1 = inlined_call_operand.hbm [shape: f32[8,32], index: 1, kind: input, shape index: {}]
  %s2 = inlined_call_operand.hbm [shape: f32[32,64], index: 2, kind: input, shape index: {}]
  %s3 = inlined_call_operand.vmem [shape: f32[1,64], index: 3, kind: input, shape index: {}]
  %s4 = inlined_call_operand.hbm [shape: f32[32,64], index: 4, kind: input, shape index: {}]
  %s5 = inlined_call_operand.vmem [shape: f32[1,64], index: 5, kind: input, shape index: {}]
  %s6 = inlined_call_operand.hbm [shape: f32[1], index: 6, kind: output, shape index: {0}]
  %s7 = inlined_call_operand.hbm [shape: f32[1], index: 7, kind: output, shape index: {1}]
  %8 = xla_tuple %s6, %s7
  %s9 = sld [smem:[#allocation0]]
  $region58: #{tpu_custom_call.1} parent=0
    _
  %s11 = ssub.s32 1, %s9
  %s12 = scalar_select 0, %s11, %s9
  $region1: #{tpu_custom_call.1} parent=0
    #allocation2 [shape = 'u8[4096]{0}', space=vmem, size = 0x1000, scoped, tag = 'input window, operand 0, single buffered']
    #allocation3 [shape = 's32[1]{0}', space=sflag, size = 0x4, scoped, tag = 'scoped memory for tpu_custom_call.1']
    #allocation4 [shape = 's32[1]{0}', space=sflag, size = 0x4, scoped, tag = 'scoped memory for tpu_custom_call.1']
    #allocation5 [shape = 'u8[4096]{0}', space=vmem, size = 0x1000, scoped, tag = 'input window, operand 1, single buffered']
    #allocation6 [shape = 's32[1]{0}', space=sflag, size = 0x4, scoped, tag = 'scoped memory for tpu_custom_call.1']
    #allocation7 [shape = 'u8[16384]{0}', space=vmem, size = 0x4000, scoped, tag = 'input window, operand 2, single buffered']
    #allocation8 [shape = 'u8[16384]{0}', space=vmem, size = 0x4000, scoped, tag = 'input window, operand 4, single buffered']
    #allocation9 [shape = 's32[1]{0}', space=sflag, size = 0x4, scoped, tag = 'scoped memory for tpu_custom_call.1']
    #allocation10 [shape = 'u8[512]{0}', space=smem, size = 0x200, scoped, tag = 'output window, operand 0, single buffered']
    #allocation11 [shape = 'u8[512]{0}', space=smem, size = 0x200, scoped, tag = 'output window, operand 1, single buffered']
    #allocation12 [shape = 's32[1]{0}', space=sflag, size = 0x4, scoped, tag = 'scoped memory for tpu_custom_call.1']
    %13 = vsyncpa [#allocation3], 0
    %14 = vsyncpa [#allocation6], 0
    %15 = vsyncpa [#allocation9], 0
    %16 = vsyncpa [#allocation4], 0
    %17 = vsyncpa [#allocation12], 0
    // Predicated region
    $region2: #{tpu_custom_call.1} parent=1 // pred_check
      _
    $region3: #{tpu_custom_call.1} parent=1 // pred_check_branch
      %19 = sbr.rel (0) target = $region5
    $region4: #{tpu_custom_call.1} parent=1 // pred_region
      %s21 = ssub.s32 128, 128
      %22 = vsyncadd [#allocation3], %s21
      %s24 = sshll.u32 [#allocation2], 4
      %s25 = int_to_ptr.vmem [resolvable:$true] %s24
      %27 = dma.hbm_to_vmem [thread:$0]  %s0, 128, %s25, [#allocation3]
    $region5: #{tpu_custom_call.1} parent=1 // pred_fallthru
      _
    // Predicated region
    $region6: #{tpu_custom_call.1} parent=1 // pred_check
      _
    $region7: #{tpu_custom_call.1} parent=1 // pred_check_branch
      %29 = sbr.rel (0) target = $region9
    $region8: #{tpu_custom_call.1} parent=1 // pred_region
      %s31 = ssub.s32 128, 128
      %32 = vsyncadd [#allocation6], %s31
      %s34 = sshll.u32 [#allocation5], 4
      %s35 = int_to_ptr.vmem [resolvable:$true] %s34
      %37 = dma.hbm_to_vmem [thread:$0]  %s1, 128, %s35, [#allocation6]
    $region9: #{tpu_custom_call.1} parent=1 // pred_fallthru
      _
    // Predicated region
    $region10: #{tpu_custom_call.1} parent=1 // pred_check
      _
    $region11: #{tpu_custom_call.1} parent=1 // pred_check_branch
      %39 = sbr.rel (0) target = $region13
    $region12: #{tpu_custom_call.1} parent=1 // pred_region
      %s41 = ssub.s32 512, 512
      %42 = vsyncadd [#allocation6], %s41
      %s43 = sshll.u32 [#allocation7], 4
      %s44 = int_to_ptr.vmem [resolvable:$true] %s43
      %49 = dma.hbm_to_vmem [thread:$0]  %s2, 512, %s44, [#allocation6], 128, 128, 8
    $region13: #{tpu_custom_call.1} parent=1 // pred_fallthru
      _
    // Predicated region
    $region14: #{tpu_custom_call.1} parent=1 // pred_check
      _
    $region15: #{tpu_custom_call.1} parent=1 // pred_check_branch
      %51 = sbr.rel (0) target = $region17
    $region16: #{tpu_custom_call.1} parent=1 // pred_region
      _
    $region17: #{tpu_custom_call.1} parent=1 // pred_fallthru
      _
    // Predicated region
    $region18: #{tpu_custom_call.1} parent=1 // pred_check
      _
    $region19: #{tpu_custom_call.1} parent=1 // pred_check_branch
      %53 = sbr.rel (0) target = $region21
    $region20: #{tpu_custom_call.1} parent=1 // pred_region
      %s55 = ssub.s32 512, 512
      %56 = vsyncadd [#allocation9], %s55
      %s57 = sshll.u32 [#allocation8], 4
      %s58 = int_to_ptr.vmem [resolvable:$true] %s57
      %63 = dma.hbm_to_vmem [thread:$0]  %s4, 512, %s58, [#allocation9], 128, 128, 8
    $region21: #{tpu_custom_call.1} parent=1 // pred_fallthru
      _
    // Predicated region
    $region22: #{tpu_custom_call.1} parent=1 // pred_check
      _
    $region23: #{tpu_custom_call.1} parent=1 // pred_check_branch
      %65 = sbr.rel (0) target = $region25
    $region24: #{tpu_custom_call.1} parent=1 // pred_region
      _
    $region25: #{tpu_custom_call.1} parent=1 // pred_fallthru
      _
    // Predicated region
    $region26: #{tpu_custom_call.1} parent=1 // pred_check
      _
    $region27: #{tpu_custom_call.1} parent=1 // pred_check_branch
      %67 = sbr.rel (0) target = $region29
    $region28: #{tpu_custom_call.1} parent=1 // pred_region
      %68 = dma.done [#allocation3], 128
    $region29: #{tpu_custom_call.1} parent=1 // pred_fallthru
      _
    // Predicated region
    $region30: #{tpu_custom_call.1} parent=1 // pred_check
      _
    $region31: #{tpu_custom_call.1} parent=1 // pred_check_branch
      %70 = sbr.rel (0) target = $region33
    $region32: #{tpu_custom_call.1} parent=1 // pred_region
      %71 = dma.done [#allocation6], 128
    $region33: #{tpu_custom_call.1} parent=1 // pred_fallthru
      _
    // Predicated region
    $region34: #{tpu_custom_call.1} parent=1 // pred_check
      _
    $region35: #{tpu_custom_call.1} parent=1 // pred_check_branch
      %73 = sbr.rel (0) target = $region37
    $region36: #{tpu_custom_call.1} parent=1 // pred_region
      %74 = dma.done [#allocation6], 512
    $region37: #{tpu_custom_call.1} parent=1 // pred_fallthru
      _
    // Predicated region
    $region38: #{tpu_custom_call.1} parent=1 // pred_check
      _
    $region39: #{tpu_custom_call.1} parent=1 // pred_check_branch
      %76 = sbr.rel (0) target = $region41
    $region40: #{tpu_custom_call.1} parent=1 // pred_region
      %77 = dma.done [#allocation9], 512
    $region41: #{tpu_custom_call.1} parent=1 // pred_fallthru
      _
    %v78 = vld [vmem:[#allocation2] sm:$0xff]
    %v79 = vld [vmem:[#allocation5] sm:$0xff]
    %v80 = vld [vmem:[#allocation7] sm:$0xff]
    %v81 = vld [vmem:[#allocation7 + $0x8] sm:$0xff]
    %v82 = vld [vmem:[#allocation7 + $0x10] sm:$0xff]
    %v83 = vld [vmem:[#allocation7 + $0x18] sm:$0xff]
    %v84 = vld [vmem:[%s3] sm:$0x1]
    %v86 = vlaneseq
    %v87 = vshrl.u32 %v86, 7
    %v88 = vsub.s32 0, %v87
    %v89 = vrot.slane %v84, %v88
    %vm91 = vcmask 261120
    %v93 = vsel %vm91, %v78, 0
    %95 = vmatprep.subr.mxu0 0.0
    %96 = vmatpush1.msra.mxu0 %v80
    %97 = vmatprep.subr.mxu0 0.0
    %98 = vmatpush1.msra.mxu0 %v81
    %99 = vmatprep.subr.mxu0 0.0
    %100 = vmatpush1.msra.mxu0 %v82
    %101 = vmatprep.subr.mxu0 0.0
    %102 = vmatpush1.msra.mxu0 %v83
    %103 = vmatprep.subr.mxu0 0.0
    %104 = vmatpush1.msra.mxu0 0.0
    %105 = vmatprep.subr.mxu0 0.0
    %106 = vmatpush1.msra.mxu0 0.0
    %107 = vmatprep.subr.mxu0 0.0
    %108 = vmatpush1.msra.mxu0 0.0
    %109 = vmatprep.subr.mxu0 0.0
    %110 = vmatpush1.msra.mxu0 0.0
    %111 = vmatprep.subr.mxu0 0.0
    %112 = vmatpush1.msra.mxu0 0.0
    %113 = vmatprep.subr.mxu0 0.0
    %114 = vmatpush1.msra.mxu0 0.0
    %115 = vmatprep.subr.mxu0 0.0
    %116 = vmatpush1.msra.mxu0 0.0
    %117 = vmatprep.subr.mxu0 0.0
    %118 = vmatpush1.msra.mxu0 0.0
    %119 = vmatprep.subr.mxu0 0.0
    %120 = vmatpush1.msra.mxu0 0.0
    %121 = vmatprep.subr.mxu0 0.0
    %122 = vmatpush1.msra.mxu0 0.0
    %123 = vmatprep.subr.mxu0 0.0
    %124 = vmatpush1.msra.mxu0 0.0
    %125 = vmatprep.subr.mxu0 0.0
    %126 = vmatpush1.msra.mxu0 0.0
    %127 = vmatprep.subr.mxu0 0.0
    %128 = vmatpush1.msra.mxu0 0.0
    %129 = vmatprep.subr.mxu0 0.0
    %130 = vmatpush1.msra.mxu0 0.0
    %131 = vmatprep.subr.mxu0 0.0
    %132 = vmatpush1.msra.mxu0 0.0
    %133 = vmatprep.subr.mxu0 0.0
    %134 = vmatpush1.msra.mxu0 0.0
    %135 = vmatprep.subr.mxu0 0.0
    %136 = vmatpush1.msra.mxu0 0.0
    %137 = vmatprep.subr.mxu0 0.0
    %138 = vmatpush1.msra.mxu0 0.0
    %139 = vmatprep.subr.mxu0 0.0
    %140 = vmatpush1.msra.mxu0 0.0
    %141 = vmatprep.subr.mxu0 0.0
    %142 = vmatpush1.msra.mxu0 0.0
    %143 = vmatprep.subr.mxu0 0.0
    %144 = vmatpush1.msra.mxu0 0.0
    %145 = vmatprep.subr.mxu0 0.0
    %146 = vmatpush1.msra.mxu0 0.0
    %147 = vmatprep.subr.mxu0 0.0
    %148 = vmatpush1.msra.mxu0 0.0
    %149 = vmatprep.subr.mxu0 0.0
    %150 = vmatpush1.msra.mxu0 0.0
    %151 = vmatprep.subr.mxu0 0.0
    %152 = vmatpush1.msra.mxu0 0.0
    %153 = vmatprep.subr.mxu0 0.0
    %154 = vmatpush1.msra.mxu0 0.0
    %155 = vmatprep.subr.mxu0 0.0
    %156 = vmatpush1.msra.mxu0 0.0
    %157 = vmatprep.subr.mxu0 0.0
    %158 = vmatpush1.msra.mxu0 0.0
    %159 = vmatprep.mubr.f32.mxu0 0.0
    %160 = vmatmul.mubr.f32.gmra.mrb[0].mxu0 %v93
    %v161 = vpop.f32.mrb[0].mxu0
    %v162 = vadd.f32 %v89, %v161
    %v163 = vpop.f32.mrb[0].mxu0
    %164 = vdwg.mxu0
    %v165 = vld [vmem:[#allocation8] sm:$0xff]
    %v166 = vld [vmem:[#allocation8 + $0x8] sm:$0xff]
    %v167 = vld [vmem:[#allocation8 + $0x10] sm:$0xff]
    %v168 = vld [vmem:[#allocation8 + $0x18] sm:$0xff]
    %v169 = vld [vmem:[%s5] sm:$0x1]
    %v171 = vlaneseq
    %v172 = vshrl.u32 %v171, 7
    %v173 = vsub.s32 0, %v172
    %v174 = vrot.slane %v169, %v173
    %v177 = vsel %vm91, %v79, 0
    %179 = vmatprep.subr.mxu0 0.0
    %180 = vmatpush1.msra.mxu0 %v165
    %181 = vmatprep.subr.mxu0 0.0
    %182 = vmatpush1.msra.mxu0 %v166
    %183 = vmatprep.subr.mxu0 0.0
    %184 = vmatpush1.msra.mxu0 %v167
    %185 = vmatprep.subr.mxu0 0.0
    %186 = vmatpush1.msra.mxu0 %v168
    %187 = vmatprep.subr.mxu0 0.0
    %188 = vmatpush1.msra.mxu0 0.0
    %189 = vmatprep.subr.mxu0 0.0
    %190 = vmatpush1.msra.mxu0 0.0
    %191 = vmatprep.subr.mxu0 0.0
    %192 = vmatpush1.msra.mxu0 0.0
    %193 = vmatprep.subr.mxu0 0.0
    %194 = vmatpush1.msra.mxu0 0.0
    %195 = vmatprep.subr.mxu0 0.0
    %196 = vmatpush1.msra.mxu0 0.0
    %197 = vmatprep.subr.mxu0 0.0
    %198 = vmatpush1.msra.mxu0 0.0
    %199 = vmatprep.subr.mxu0 0.0
    %200 = vmatpush1.msra.mxu0 0.0
    %201 = vmatprep.subr.mxu0 0.0
    %202 = vmatpush1.msra.mxu0 0.0
    %203 = vmatprep.subr.mxu0 0.0
    %204 = vmatpush1.msra.mxu0 0.0
    %205 = vmatprep.subr.mxu0 0.0
    %206 = vmatpush1.msra.mxu0 0.0
    %207 = vmatprep.subr.mxu0 0.0
    %208 = vmatpush1.msra.mxu0 0.0
    %209 = vmatprep.subr.mxu0 0.0
    %210 = vmatpush1.msra.mxu0 0.0
    %211 = vmatprep.subr.mxu0 0.0
    %212 = vmatpush1.msra.mxu0 0.0
    %213 = vmatprep.subr.mxu0 0.0
    %214 = vmatpush1.msra.mxu0 0.0
    %215 = vmatprep.subr.mxu0 0.0
    %216 = vmatpush1.msra.mxu0 0.0
    %217 = vmatprep.subr.mxu0 0.0
    %218 = vmatpush1.msra.mxu0 0.0
    %219 = vmatprep.subr.mxu0 0.0
    %220 = vmatpush1.msra.mxu0 0.0
    %221 = vmatprep.subr.mxu0 0.0
    %222 = vmatpush1.msra.mxu0 0.0
    %223 = vmatprep.subr.mxu0 0.0
    %224 = vmatpush1.msra.mxu0 0.0
    %225 = vmatprep.subr.mxu0 0.0
    %226 = vmatpush1.msra.mxu0 0.0
    %227 = vmatprep.subr.mxu0 0.0
    %228 = vmatpush1.msra.mxu0 0.0
    %229 = vmatprep.subr.mxu0 0.0
    %230 = vmatpush1.msra.mxu0 0.0
    %231 = vmatprep.subr.mxu0 0.0
    %232 = vmatpush1.msra.mxu0 0.0
    %233 = vmatprep.subr.mxu0 0.0
    %234 = vmatpush1.msra.mxu0 0.0
    %235 = vmatprep.subr.mxu0 0.0
    %236 = vmatpush1.msra.mxu0 0.0
    %237 = vmatprep.subr.mxu0 0.0
    %238 = vmatpush1.msra.mxu0 0.0
    %239 = vmatprep.subr.mxu0 0.0
    %240 = vmatpush1.msra.mxu0 0.0
    %241 = vmatprep.subr.mxu0 0.0
    %242 = vmatpush1.msra.mxu0 0.0
    %243 = vmatprep.mubr.f32.mxu0 0.0
    %244 = vmatmul.mubr.f32.gmra.mrb[0].mxu0 %v177
    %v245 = vpop.f32.mrb[0].mxu0
    %v246 = vadd.f32 %v174, %v245
    %v247 = vpop.f32.mrb[0].mxu0
    %248 = vdwg.mxu0
    %vm249 = vcmask 523264
    %v251 = vsel %vm249, %v162, 0
    %v254 = vsel %vm249, %v246, 0
    %256 = vmatprep.subr.mxu0 0.0
    %257 = vmatpush1.xpose.msra.mxu0 %v254
    %258 = vmatprep.subr.mxu0 0.0
    %259 = vmatpush1.xpose.msra.mxu0 0.0
    %260 = vmatprep.subr.mxu0 0.0
    %261 = vmatpush1.xpose.msra.mxu0 0.0
    %262 = vmatprep.subr.mxu0 0.0
    %263 = vmatpush1.xpose.msra.mxu0 0.0
    %264 = vmatprep.subr.mxu0 0.0
    %265 = vmatpush1.xpose.msra.mxu0 0.0
    %266 = vmatprep.subr.mxu0 0.0
    %267 = vmatpush1.xpose.msra.mxu0 0.0
    %268 = vmatprep.subr.mxu0 0.0
    %269 = vmatpush1.xpose.msra.mxu0 0.0
    %270 = vmatprep.subr.mxu0 0.0
    %271 = vmatpush1.xpose.msra.mxu0 0.0
    %272 = vmatprep.subr.mxu0 0.0
    %273 = vmatpush1.xpose.msra.mxu0 0.0
    %274 = vmatprep.subr.mxu0 0.0
    %275 = vmatpush1.xpose.msra.mxu0 0.0
    %276 = vmatprep.subr.mxu0 0.0
    %277 = vmatpush1.xpose.msra.mxu0 0.0
    %278 = vmatprep.subr.mxu0 0.0
    %279 = vmatpush1.xpose.msra.mxu0 0.0
    %280 = vmatprep.subr.mxu0 0.0
    %281 = vmatpush1.xpose.msra.mxu0 0.0
    %282 = vmatprep.subr.mxu0 0.0
    %283 = vmatpush1.xpose.msra.mxu0 0.0
    %284 = vmatprep.subr.mxu0 0.0
    %285 = vmatpush1.xpose.msra.mxu0 0.0
    %286 = vmatprep.subr.mxu0 0.0
    %287 = vmatpush1.xpose.msra.mxu0 0.0
    %288 = vmatprep.subr.mxu0 0.0
    %289 = vmatpush1.xpose.msra.mxu0 0.0
    %290 = vmatprep.subr.mxu0 0.0
    %291 = vmatpush1.xpose.msra.mxu0 0.0
    %292 = vmatprep.subr.mxu0 0.0
    %293 = vmatpush1.xpose.msra.mxu0 0.0
    %294 = vmatprep.subr.mxu0 0.0
    %295 = vmatpush1.xpose.msra.mxu0 0.0
    %296 = vmatprep.subr.mxu0 0.0
    %297 = vmatpush1.xpose.msra.mxu0 0.0
    %298 = vmatprep.subr.mxu0 0.0
    %299 = vmatpush1.xpose.msra.mxu0 0.0
    %300 = vmatprep.subr.mxu0 0.0
    %301 = vmatpush1.xpose.msra.mxu0 0.0
    %302 = vmatprep.subr.mxu0 0.0
    %303 = vmatpush1.xpose.msra.mxu0 0.0
    %304 = vmatprep.subr.mxu0 0.0
    %305 = vmatpush1.xpose.msra.mxu0 0.0
    %306 = vmatprep.subr.mxu0 0.0
    %307 = vmatpush1.xpose.msra.mxu0 0.0
    %308 = vmatprep.subr.mxu0 0.0
    %309 = vmatpush1.xpose.msra.mxu0 0.0
    %310 = vmatprep.subr.mxu0 0.0
    %311 = vmatpush1.xpose.msra.mxu0 0.0
    %312 = vmatprep.subr.mxu0 0.0
    %313 = vmatpush1.xpose.msra.mxu0 0.0
    %314 = vmatprep.subr.mxu0 0.0
    %315 = vmatpush1.xpose.msra.mxu0 0.0
    %316 = vmatprep.subr.mxu0 0.0
    %317 = vmatpush1.xpose.msra.mxu0 0.0
    %318 = vmatprep.subr.mxu0 0.0
    %319 = vmatpush1.xpose.msra.mxu0 0.0
    %320 = vmatprep.mubr.f32.mxu0 0.0
    %321 = vmatmul.mubr.f32.gmra.mrb[0].mxu0 %v251
    %v322 = vpop.f32.mrb[0].mxu0
    %v323 = vadd.f32 0.0, %v322
    %v324 = vpop.f32.mrb[0].mxu0
    %325 = vdwg.mxu0
    %v326 = vlaneseq
    %v327 = vshrl.u32 %v326, 7
    %v328 = vlaneseq
    %v329 = vand.u32 %v328, 127
    %vm330 = vcmp.eq.s32.totalorder %v327, %v329
    %v331 = vsel %vm330, %v323, 0.0
    %vm332 = vcmask 64512
    %v333 = vsel %vm332, %v331, 0.0
    %334 = vadd.xlane.f32.xlu0 %v333
    %v335 = vpop.xlane.xlu0 %334
    %v336 = vrot.slane %v333, 4
    %v337 = vadd.f32 %v333, %v336
    %v338 = vrot.slane %v337, 2
    %v339 = vadd.f32 %v337, %v338
    %v340 = vrot.slane %v339, 1
    %v341 = vadd.f32 %v339, %v340
    %v342 = vsel %vm332, %v323, -inf
    %343 = vmax.xlane.f32.xlu0 %v342
    %v344 = vpop.xlane.xlu0 %343
    %v345 = vsub.f32 %v323, %v344
    %v346 = vmul.f32 %v345, 1.442695
    %v347 = vpow.pop %v346
    %v348 = vsel %vm332, %v347, 0.0
    %349 = vadd.xlane.f32.xlu0 %v348
    %v350 = vpop.xlane.xlu0 %349
    %v351 = vlog2.pop %v350
    %v352 = vmul.f32 %v351, 0.6931472
    %v353 = vadd.f32 %v344, %v352
    %v354 = vsub.f32 %v353, %v335
    %vm355 = vcmask 7168
    %v356 = vsel %vm355, %v354, 0.0
    %357 = vadd.xlane.f32.xlu0 %v356
    %v358 = vpop.xlane.xlu0 %357
    %v359 = vrot.slane %v358, 4
    %v360 = vadd.f32 %v358, %v359
    %v361 = vrot.slane %v360, 2
    %v362 = vadd.f32 %v360, %v361
    %v363 = vrot.slane %v362, 1
    %v364 = vadd.f32 %v362, %v363
    %s365 = vtos %v364
    %vm366 = vcmp.ge.f32.partialorder %v335, %v344
    %v367 = vsel %vm366, 1.0, 0.0
    %v368 = vsel %vm355, %v367, 0.0
    %369 = vadd.xlane.f32.xlu0 %v368
    %v370 = vpop.xlane.xlu0 %369
    %v371 = vrot.slane %v370, 4
    %v372 = vadd.f32 %v370, %v371
    %v373 = vrot.slane %v372, 2
    %v374 = vadd.f32 %v372, %v373
    %v375 = vrot.slane %v374, 1
    %v376 = vadd.f32 %v374, %v375
    %s377 = vtos %v376
    %v378 = vrot.slane %v342, 4
    %v379 = vmax.f32 %v342, %v378
    %v380 = vrot.slane %v379, 2
    %v381 = vmax.f32 %v379, %v380
    %v382 = vrot.slane %v381, 1
    %v383 = vmax.f32 %v381, %v382
    %v384 = vsub.f32 %v323, %v383
    %v385 = vmul.f32 %v384, 1.442695
    %v386 = vpow.pop %v385
    %v387 = vsel %vm332, %v386, 0.0
    %v388 = vrot.slane %v387, 4
    %v389 = vadd.f32 %v387, %v388
    %v390 = vrot.slane %v389, 2
    %v391 = vadd.f32 %v389, %v390
    %v392 = vrot.slane %v391, 1
    %v393 = vadd.f32 %v391, %v392
    %v394 = vlog2.pop %v393
    %v395 = vmul.f32 %v394, 0.6931472
    %v396 = vadd.f32 %v383, %v395
    %v397 = vsub.f32 %v396, %v341
    %vm398 = vcmask 57344
    %v399 = vsel %vm398, %v397, 0.0
    %400 = vadd.xlane.f32.xlu0 %v399
    %v401 = vpop.xlane.xlu0 %400
    %v402 = vrot.slane %v401, 4
    %v403 = vadd.f32 %v401, %v402
    %v404 = vrot.slane %v403, 2
    %v405 = vadd.f32 %v403, %v404
    %v406 = vrot.slane %v405, 1
    %v407 = vadd.f32 %v405, %v406
    %s408 = vtos %v407
    %vm409 = vcmp.ge.f32.partialorder %v341, %v383
    %v410 = vsel %vm409, 1.0, 0.0
    %v411 = vsel %vm398, %v410, 0.0
    %412 = vadd.xlane.f32.xlu0 %v411
    %v413 = vpop.xlane.xlu0 %412
    %v414 = vrot.slane %v413, 4
    %v415 = vadd.f32 %v413, %v414
    %v416 = vrot.slane %v415, 2
    %v417 = vadd.f32 %v415, %v416
    %v418 = vrot.slane %v417, 1
    %v419 = vadd.f32 %v417, %v418
    %s420 = vtos %v419
    %s421 = sadd.f32 %s365, %s408
    %s422 = smul.f32 %s421, 0.5
    %s423 = scalar_lea.smem [#allocation10], 0
    %424 = sst [smem:[%s423]] %s422
    %s425 = sadd.f32 %s377, %s420
    %s426 = smul.f32 %s425, 0.0625
    %s427 = scalar_lea.smem [#allocation11], 0
    %428 = sst [smem:[%s427]] %s426
    // Predicated region
    $region42: #{tpu_custom_call.1} parent=1 // pred_check
      _
    $region43: #{tpu_custom_call.1} parent=1 // pred_check_branch
      %430 = sbr.rel (0) target = $region45
    $region44: #{tpu_custom_call.1} parent=1 // pred_region
      %s432 = ssub.s32 16, 16
      %433 = vsyncadd [#allocation4], %s432
      %436 = dma.smem_to_hbm [#allocation10], 16, %s6, [#allocation4]
    $region45: #{tpu_custom_call.1} parent=1 // pred_fallthru
      _
    // Predicated region
    $region46: #{tpu_custom_call.1} parent=1 // pred_check
      _
    $region47: #{tpu_custom_call.1} parent=1 // pred_check_branch
      %438 = sbr.rel (0) target = $region49
    $region48: #{tpu_custom_call.1} parent=1 // pred_region
      %s440 = ssub.s32 16, 16
      %441 = vsyncadd [#allocation12], %s440
      %444 = dma.smem_to_hbm [#allocation11], 16, %s7, [#allocation12]
    $region49: #{tpu_custom_call.1} parent=1 // pred_fallthru
      _
    // Predicated region
    $region50: #{tpu_custom_call.1} parent=1 // pred_check
      _
    $region51: #{tpu_custom_call.1} parent=1 // pred_check_branch
      %446 = sbr.rel (0) target = $region53
    $region52: #{tpu_custom_call.1} parent=1 // pred_region
      %447 = dma.done [#allocation4], 16
    $region53: #{tpu_custom_call.1} parent=1 // pred_fallthru
      _
    // Predicated region
    $region54: #{tpu_custom_call.1} parent=1 // pred_check
      _
    $region55: #{tpu_custom_call.1} parent=1 // pred_check_branch
      %449 = sbr.rel (0) target = $region57
    $region56: #{tpu_custom_call.1} parent=1 // pred_region
      %450 = dma.done [#allocation12], 16
    $region57: #{tpu_custom_call.1} parent=1 // pred_fallthru
      _
    %451 = sfence
    %452 = vsyncpa [#allocation3], 1
    %453 = vsyncpa [#allocation6], 1
    %454 = vsyncpa [#allocation9], 1
    %455 = vsyncpa [#allocation4], 1
    %456 = vsyncpa [#allocation12], 1

</llo_original>
